<compile_context>
chip_gen: v7x
topology: tpu7x:2x2x1
jax: 0.10.0
libtpu: 0.0.40
codegen_flags: <defaults>
</compile_context>

<pallas_src>
import jax
import jax.numpy as jnp
from jax import lax
from jax.experimental import pallas as pl
from jax.experimental.pallas import tpu as pltpu


def _round_up(x, m):
    return ((x + m - 1) // m) * m


def _make_partial_sums_kernel(n_rows, tile_rows, d, need_mask):
    """Kernel factory.  One grid step reduces a (tile_rows, d) slab of y / yhat
    into lane-wise partial sums:
        out[i, 0, :] = sum over rows of (y - yhat)^2
        out[i, 1, :] = sum over rows of y^2
    Grid steps are fully independent (two-phase reduction); the cross-lane
    reduce + sqrt + regularizer are finished in the wrapper."""

    def kernel(y_ref, yhat_ref, out_ref):
        y = y_ref[...].astype(jnp.float32)
        yhat = yhat_ref[...].astype(jnp.float32)
        if need_mask:
            # Last tile is ragged: rows >= n_rows contain unspecified data.
            row0 = pl.program_id(0) * tile_rows
            rid = lax.broadcasted_iota(jnp.int32, (tile_rows, d), 0)
            valid = (row0 + rid) < n_rows
            y = jnp.where(valid, y, 0.0)
            yhat = jnp.where(valid, yhat, 0.0)
        diff = y - yhat
        out_ref[0, 0:1, :] = jnp.sum(diff * diff, axis=0, keepdims=True)
        out_ref[0, 1:2, :] = jnp.sum(y * y, axis=0, keepdims=True)

    return kernel


def rnmse_loss_with_sparsity_regularizer(yhat, y, s_params, alpha,
                                         *, target_block_bytes=4 << 20):
    """yhat, y: [n_samples, prediction_dim]; s_params: [K] vector of the model's
    scalar 's_' weights; alpha: python float.  Returns shape (1,) loss."""
    assert y.ndim == 2 and y.shape == yhat.shape
    n_rows, d = map(int, y.shape)

    item_y = jnp.dtype(y.dtype).itemsize
    item_yh = jnp.dtype(yhat.dtype).itemsize
    itemsize = max(item_y, item_yh)
    # Sublane packing requirement is set by the narrowest dtype
    # (bf16 packs two rows per sublane, int8/fp8 four).
    sublane = {4: 8, 2: 16, 1: 32}.get(min(item_y, item_yh), 8)

    # ---- choose tile_rows (rows per grid step) ----
    row_bytes = max(1, d * itemsize)
    # ~4 MiB of input per operand per step by default; cap at 8 MiB so the
    # double-buffered pipeline footprint stays <= ~32 MiB on every generation.
    # TODO(synk): inputs with an extremely wide last dim (one row >> 8 MiB)
    # would additionally need tiling along D; not handled here.
    tgt = int(min(max(int(target_block_bytes), sublane * row_bytes), 8 << 20))
    rows_target = _round_up(max(sublane, tgt // row_bytes), sublane)

    input_bytes = n_rows * row_bytes
    if n_rows <= rows_target:
        if input_bytes >= (1 << 19) and n_rows > 2 * sublane:
            # Medium input that would otherwise be a single grid step: split so
            # the "parallel" axis has >=2 steps for v7x's two TensorCores.
            tile_rows = _round_up(pl.cdiv(n_rows, 2), sublane)
        else:
            tile_rows = n_rows   # full-dim block is legal even if unaligned
    else:
        tile_rows = rows_target

    num_tiles = int(pl.cdiv(n_rows, tile_rows))
    need_mask = (num_tiles * tile_rows) != n_rows

    # Explicit scoped-VMEM budget: covers 2 inputs x 2 pipeline buffers + the
    # (tiny) output + margin; >= 32 MiB (safe on v5e's 16 MiB default), capped
    # at 48 MiB (headroom under v7x's 64 MiB physical VMEM).
    tile_bytes = tile_rows * row_bytes
    out_bytes = num_tiles * 2 * d * 4
    vmem_limit = int(min(max(4 * tile_bytes + 2 * out_bytes + (4 << 20),
                             32 << 20), 48 << 20))

    kernel = _make_partial_sums_kernel(n_rows, tile_rows, d, need_mask)

    # ---- phase 1: per-tile lane-wise partial sums (parallel grid) ----
    parts = pl.pallas_call(
        kernel,
        out_shape=jax.ShapeDtypeStruct((num_tiles, 2, d), jnp.float32),
        grid=(num_tiles,),
        in_specs=[
            pl.BlockSpec((tile_rows, d), lambda i: (i, 0)),   # y tile
            pl.BlockSpec((tile_rows, d), lambda i: (i, 0)),   # yhat tile
        ],
        out_specs=pl.BlockSpec((1, 2, d), lambda i: (i, 0, 0)),
        compiler_params=pltpu.CompilerParams(
            dimension_semantics=("parallel",),
            vmem_limit_bytes=vmem_limit),
    )(y, yhat)

    # ---- phase 2 (tiny, plain JAX): finish the reduction + regularizer ----
    enum = jnp.sum(parts[:, 0, :])
    denum = jnp.sum(parts[:, 1, :])
    # TODO(synk): the PyTorch reference raises if abs(denum) < 0.1; a
    # data-dependent host-side exception has no traced-JAX equivalent.
    rnmse = jnp.sqrt(enum / denum)
    reg = jnp.sum(jnp.abs(jnp.asarray(s_params).astype(jnp.float32)))
    # Match PyTorch: regularization_loss is shape (1,), so final loss is (1,).
    return (rnmse + jnp.float32(alpha) * reg).reshape(1)


def _reference(yhat, y, s_params, alpha):
    yf = y.astype(jnp.float32)
    yhf = yhat.astype(jnp.float32)
    enum = jnp.sum((yf - yhf) ** 2)
    denum = jnp.sum(yf ** 2)
    reg = jnp.sum(jnp.abs(s_params.astype(jnp.float32)))
    return (jnp.sqrt(enum / denum) + alpha * reg).reshape(1)


if __name__ == "__main__":
    key = jax.random.PRNGKey(0)
    k1, k2, k3, k4, k5, k6, k7 = jax.random.split(key, 7)
    alpha = 0.05
    s_params = jax.random.normal(k3, (4,), dtype=jnp.float32)

    # -- test 1: small shapes consistent with the module's forward --
    # n_samples = 16, prediction_dimensionality = 32, K = 4 scalar 's_' params
    N, D = 16, 32
    y = jax.random.normal(k1, (N, D), dtype=jnp.float32)
    yhat = y + 0.1 * jax.random.normal(k2, (N, D), dtype=jnp.float32)
    loss = rnmse_loss_with_sparsity_regularizer(yhat, y, s_params, alpha)
    jax.block_until_ready(loss)
    ref = _reference(yhat, y, s_params, alpha)
    assert loss.shape == (1,)
    assert jnp.allclose(loss, ref, rtol=1e-5, atol=1e-5), (loss, ref)

    # -- test 2: ragged row count + bf16 inputs, tiny block target to force a
    #    multi-tile parallel grid with a masked last tile (exercises the
    #    in-kernel iota mask and bf16 sublane-16 rounding) --
    N2, D2 = 250, 96
    y2 = jax.random.normal(k4, (N2, D2), dtype=jnp.float32).astype(jnp.bfloat16)
    yhat2 = (y2.astype(jnp.float32)
             + 0.1 * jax.random.normal(k5, (N2, D2), dtype=jnp.float32)
             ).astype(jnp.bfloat16)
    loss2 = rnmse_loss_with_sparsity_regularizer(
        yhat2, y2, s_params, alpha, target_block_bytes=16 * D2 * 2)
    jax.block_until_ready(loss2)
    ref2 = _reference(yhat2, y2, s_params, alpha)
    assert loss2.shape == (1,)
    assert jnp.allclose(loss2, ref2, rtol=1e-4, atol=1e-4), (loss2, ref2)

    # -- test 3: medium input that fits one tile -> split into 2 grid steps
    #    (v7x two-TensorCore path), f32, aligned, no mask --
    N3, D3 = 2048, 128
    y3 = jax.random.normal(k6, (N3, D3), dtype=jnp.float32)
    yhat3 = y3 + 0.05 * jax.random.normal(k7, (N3, D3), dtype=jnp.float32)
    loss3 = rnmse_loss_with_sparsity_regularizer(yhat3, y3, s_params, alpha)
    jax.block_until_ready(loss3)
    ref3 = _reference(yhat3, y3, s_params, alpha)
    assert jnp.allclose(loss3, ref3, rtol=1e-5, atol=1e-5), (loss3, ref3)

    # -- test 4: unaligned single full-dim block (13 rows, 40 cols) --
    N4, D4 = 13, 40
    y4 = jax.random.normal(k1, (N4, D4), dtype=jnp.float32)
    yhat4 = y4 + 0.1 * jax.random.normal(k2, (N4, D4), dtype=jnp.float32)
    loss4 = rnmse_loss_with_sparsity_regularizer(yhat4, y4, s_params, alpha)
    jax.block_until_ready(loss4)
    ref4 = _reference(yhat4, y4, s_params, alpha)
    assert jnp.allclose(loss4, ref4, rtol=1e-5, atol=1e-5), (loss4, ref4)

    print("KERNEL_OK")
</pallas_src>

<mosaic_0001>
module attributes {stable_mosaic.version = 11 : i64} {
  func.func @kernel(%arg0: i32, %arg1: memref<16x32xf32, #tpu.memory_space<vmem>>, %arg2: memref<16x32xf32, #tpu.memory_space<vmem>>, %arg3: memref<1x2x32xf32, #tpu.memory_space<vmem>>) attributes {dimension_semantics = [#tpu.dimension_semantics<parallel>], iteration_bounds = array<i64: 1>, scalar_prefetch = 0 : i64, scratch_operands = 0 : i64, tpu.core_type = #tpu.core_type<tc>, window_params = [{transform_indices = @transform_0, window_bounds = array<i64: 16, 32>}, {transform_indices = @transform_1, window_bounds = array<i64: 16, 32>}, {transform_indices = @transform_2, window_bounds = array<i64: 1, 2, 32>}]} {
    %c0 = arith.constant 0 : index
    %c0_0 = arith.constant 0 : index
    %0 = vector.load %arg1[%c0, %c0_0] : memref<16x32xf32, #tpu.memory_space<vmem>>, vector<16x32xf32>
    %c0_1 = arith.constant 0 : index
    %c0_2 = arith.constant 0 : index
    %1 = vector.load %arg2[%c0_1, %c0_2] : memref<16x32xf32, #tpu.memory_space<vmem>>, vector<16x32xf32>
    %2 = arith.subf %0, %1 : vector<16x32xf32>
    %3 = arith.mulf %2, %2 : vector<16x32xf32>
    %cst = arith.constant dense<0.000000e+00> : vector<32xf32>
    %4 = vector.multi_reduction <add>, %3, %cst [0] : vector<16x32xf32> to vector<32xf32>
    %5 = vector.shape_cast %4 : vector<32xf32> to vector<1x32xf32>
    %c0_3 = arith.constant 0 : index
    %c0_4 = arith.constant 0 : index
    %c0_5 = arith.constant 0 : index
    %6 = vector.load %arg3[%c0_3, %c0_4, %c0_5] : memref<1x2x32xf32, #tpu.memory_space<vmem>>, vector<1x1x32xf32>
    %7 = vector.shape_cast %6 : vector<1x1x32xf32> to vector<1x32xf32>
    %8 = vector.shape_cast %5 : vector<1x32xf32> to vector<1x1x32xf32>
    tpu.vector_store %arg3[%c0_3, %c0_4, %c0_5], %8 {strides = array<i32>} : memref<1x2x32xf32, #tpu.memory_space<vmem>>, vector<1x1x32xf32>,
    %9 = arith.mulf %0, %0 : vector<16x32xf32>
    %cst_6 = arith.constant dense<0.000000e+00> : vector<32xf32>
    %10 = vector.multi_reduction <add>, %9, %cst_6 [0] : vector<16x32xf32> to vector<32xf32>
    %11 = vector.shape_cast %10 : vector<32xf32> to vector<1x32xf32>
    %c0_7 = arith.constant 0 : index
    %c1 = arith.constant 1 : index
    %c0_8 = arith.constant 0 : index
    %12 = vector.load %arg3[%c0_7, %c1, %c0_8] : memref<1x2x32xf32, #tpu.memory_space<vmem>>, vector<1x1x32xf32>
    %13 = vector.shape_cast %12 : vector<1x1x32xf32> to vector<1x32xf32>
    %14 = vector.shape_cast %11 : vector<1x32xf32> to vector<1x1x32xf32>
    tpu.vector_store %arg3[%c0_7, %c1, %c0_8], %14 {strides = array<i32>} : memref<1x2x32xf32, #tpu.memory_space<vmem>>, vector<1x1x32xf32>,
    return
  }
  func.func @transform_0(%arg0: i32) -> (i32, i32) {
    %c0_i32 = arith.constant 0 : i32
    %c0_i32_0 = arith.constant 0 : i32
    return %arg0, %c0_i32 : i32, i32
  }
  func.func @transform_1(%arg0: i32) -> (i32, i32) {
    %c0_i32 = arith.constant 0 : i32
    %c0_i32_0 = arith.constant 0 : i32
    return %arg0, %c0_i32 : i32, i32
  }
  func.func @transform_2(%arg0: i32) -> (i32, i32, i32) {
    %c0_i32 = arith.constant 0 : i32
    %c0_i32_0 = arith.constant 0 : i32
    %c0_i32_1 = arith.constant 0 : i32
    return %arg0, %c0_i32, %c0_i32_0 : i32, i32, i32
  }
}

</mosaic_0001>

<llo_original>
// kernel: tpu_custom_call.1
$region0: #{tpu_custom_call.1}
  #allocation0 [shape = 'u32[]', space=smem, size = 0x4, offset = 0x4, fixed_abs, tag = 'smem constant byte address 0x4 - core index']
  #allocation1 [shape = 'u32[144,128]{1,0:T(1,128)}', space=vmem, size = 0x12000, scoped, tag = 'internal scratch']
  %s0 = inlined_call_operand.hbm [shape: f32[16,32], index: 0, kind: input, shape index: {}]
  %s1 = inlined_call_operand.hbm [shape: f32[16,32], index: 1, kind: input, shape index: {}]
  %s2 = inlined_call_operand.hbm [shape: f32[1,2,32], index: 2, kind: output, shape index: {}]
  %s3 = sld [smem:[#allocation0]]
  $region26: #{tpu_custom_call.1} parent=0
    _
  %s5 = ssub.s32 1, %s3
  %s6 = scalar_select 0, %s5, %s3
  $region1: #{tpu_custom_call.1} parent=0
    #allocation2 [shape = 'u8[8192]{0}', space=vmem, size = 0x2000, scoped, tag = 'input window, operand 0, single buffered']
    #allocation3 [shape = 's32[1]{0}', space=sflag, size = 0x4, scoped, tag = 'scoped memory for tpu_custom_call.1']
    #allocation4 [shape = 's32[1]{0}', space=sflag, size = 0x4, scoped, tag = 'scoped memory for tpu_custom_call.1']
    #allocation5 [shape = 'u8[8192]{0}', space=vmem, size = 0x2000, scoped, tag = 'input window, operand 1, single buffered']
    #allocation6 [shape = 's32[1]{0}', space=sflag, size = 0x4, scoped, tag = 'scoped memory for tpu_custom_call.1']
    #allocation7 [shape = 'u8[1024]{0}', space=vmem, size = 0x400, scoped, tag = 'output window, operand 0, single buffered']
    %7 = vsyncpa [#allocation3], 0
    %8 = vsyncpa [#allocation6], 0
    %9 = vsyncpa [#allocation4], 0
    // Predicated region
    $region2: #{tpu_custom_call.1} parent=1 // pred_check
      _
    $region3: #{tpu_custom_call.1} parent=1 // pred_check_branch
      %11 = sbr.rel (0) target = $region5
    $region4: #{tpu_custom_call.1} parent=1 // pred_region
      %s13 = ssub.s32 256, 256
      %14 = vsyncadd [#allocation3], %s13
      %s15 = sshll.u32 [#allocation2], 4
      %s16 = int_to_ptr.vmem [resolvable:$true] %s15
      %21 = dma.hbm_to_vmem [thread:$0]  %s0, 256, %s16, [#allocation3], 128, 128, 8
    $region5: #{tpu_custom_call.1} parent=1 // pred_fallthru
      _
    // Predicated region
    $region6: #{tpu_custom_call.1} parent=1 // pred_check
      _
    $region7: #{tpu_custom_call.1} parent=1 // pred_check_branch
      %23 = sbr.rel (0) target = $region9
    $region8: #{tpu_custom_call.1} parent=1 // pred_region
      %s25 = ssub.s32 256, 256
      %26 = vsyncadd [#allocation6], %s25
      %s27 = sshll.u32 [#allocation5], 4
      %s28 = int_to_ptr.vmem [resolvable:$true] %s27
      %33 = dma.hbm_to_vmem [thread:$0]  %s1, 256, %s28, [#allocation6], 128, 128, 8
    $region9: #{tpu_custom_call.1} parent=1 // pred_fallthru
      _
    // Predicated region
    $region10: #{tpu_custom_call.1} parent=1 // pred_check
      _
    $region11: #{tpu_custom_call.1} parent=1 // pred_check_branch
      %35 = sbr.rel (0) target = $region13
    $region12: #{tpu_custom_call.1} parent=1 // pred_region
      %36 = dma.done [#allocation3], 256
    $region13: #{tpu_custom_call.1} parent=1 // pred_fallthru
      _
    // Predicated region
    $region14: #{tpu_custom_call.1} parent=1 // pred_check
      _
    $region15: #{tpu_custom_call.1} parent=1 // pred_check_branch
      %38 = sbr.rel (0) target = $region17
    $region16: #{tpu_custom_call.1} parent=1 // pred_region
      %39 = dma.done [#allocation6], 256
    $region17: #{tpu_custom_call.1} parent=1 // pred_fallthru
      _
    %v40 = vld [vmem:[#allocation2] sm:$0xff]
    %v41 = vld [vmem:[#allocation2 + $0x8] sm:$0xff]
    %v42 = vld [vmem:[#allocation5] sm:$0xff]
    %v43 = vld [vmem:[#allocation5 + $0x8] sm:$0xff]
    %v44 = vsub.f32 %v40, %v42
    %v45 = vsub.f32 %v41, %v43
    %v46 = vmul.f32 %v44, %v44
    %v47 = vmul.f32 %v45, %v45
    %vm48 = vcmask 261120
    %v49 = vsel %vm48, %v46, 0.0
    %v50 = vsel %vm48, %v47, 0.0
    %v51 = vadd.f32 %v49, %v50
    %v52 = vrot.slane %v51, 4
    %v53 = vadd.f32 %v51, %v52
    %v54 = vrot.slane %v53, 2
    %v55 = vadd.f32 %v53, %v54
    %v56 = vrot.slane %v55, 1
    %v57 = vadd.f32 %v55, %v56
    %vm58 = vcmask 253952
    %59 = vst.msk [vmem:[#allocation7] sm:$0x1] %vm58, %v57
    %v60 = vmul.f32 %v40, %v40
    %v61 = vmul.f32 %v41, %v41
    %v62 = vsel %vm48, %v60, 0.0
    %v63 = vsel %vm48, %v61, 0.0
    %v64 = vadd.f32 %v62, %v63
    %v65 = vrot.slane %v64, 4
    %v66 = vadd.f32 %v64, %v65
    %v67 = vrot.slane %v66, 2
    %v68 = vadd.f32 %v66, %v67
    %v69 = vrot.slane %v68, 1
    %v70 = vadd.f32 %v68, %v69
    %71 = vst.msk [vmem:[#allocation7 + $0x1] sm:$0x1] %vm58, %v70
    // Predicated region
    $region18: #{tpu_custom_call.1} parent=1 // pred_check
      _
    $region19: #{tpu_custom_call.1} parent=1 // pred_check_branch
      %73 = sbr.rel (0) target = $region21
    $region20: #{tpu_custom_call.1} parent=1 // pred_region
      %s75 = ssub.s32 32, 32
      %76 = vsyncadd [#allocation4], %s75
      %s78 = sshll.u32 [#allocation7], 4
      %s79 = int_to_ptr.vmem [resolvable:$true] %s78
      %81 = dma.vmem_to_hbm [thread:$0]  %s79, 32, %s2, [#allocation4]
    $region21: #{tpu_custom_call.1} parent=1 // pred_fallthru
      _
    // Predicated region
    $region22: #{tpu_custom_call.1} parent=1 // pred_check
      _
    $region23: #{tpu_custom_call.1} parent=1 // pred_check_branch
      %83 = sbr.rel (0) target = $region25
    $region24: #{tpu_custom_call.1} parent=1 // pred_region
      %84 = dma.done [#allocation4], 32
    $region25: #{tpu_custom_call.1} parent=1 // pred_fallthru
      _
    %85 = vsyncpa [#allocation3], 1
    %86 = vsyncpa [#allocation6], 1
    %87 = vsyncpa [#allocation4], 1

</llo_original>
